<compile_context>
chip_gen: v7x
topology: tpu7x:2x2x1
jax: 0.10.0
libtpu: 0.0.40
codegen_flags: <defaults>
</compile_context>

<pallas_src>
import functools

import jax
import jax.numpy as jnp
from jax.experimental import pallas as pl
from jax.experimental.pallas import tpu as pltpu


# ---------------------------------------------------------------------------
# Helpers
# ---------------------------------------------------------------------------

def _round_up(a, m):
    return (a + m - 1) // m * m


def _recip(s):
    # EUP approximate reciprocal + 2 Newton-Raphson steps -> f32-accurate 1/s (s >= 1 here).
    r = pl.reciprocal(s, approx=True)
    r = r * (2.0 - s * r)
    r = r * (2.0 - s * r)
    return r


def _focal_weight(q, gamma):
    """q**gamma with q in [0, 1].  Integer gamma -> repeated multiply (VALU only);
    half-integer gamma -> q^k * sqrt(q) (single EUP op); otherwise jnp.power (log+exp)."""
    g = float(gamma)
    if g == int(g) and 0 <= int(g) <= 8:
        gi = int(g)
        if gi == 0:
            return jnp.ones_like(q)
        w = q
        for _ in range(gi - 1):
            w = w * q
        return w
    if 2.0 * g == int(2.0 * g) and 0.0 < g <= 8.0:      # half-integer: q^k * sqrt(q)
        w = jnp.sqrt(q)
        for _ in range(int(g)):
            w = w * q
        return w
    return jnp.power(q, g)


def _tile_scalar(v):
    """Reduce a (rows, cols) tile to a (1, 1, 1) partial: lanes first (XLU slot has
    slack in this VALU/EUP/DMA-bound kernel), then sublanes."""
    return jnp.sum(jnp.sum(v, axis=1, keepdims=True), axis=0, keepdims=True)[None]


def _seg_butterfly(v, group, op, lane):
    """Segmented reduce over aligned groups of `group` consecutive lanes (`group` divides
    128, power of two).  XOR-butterfly from pltpu.roll; the partner lane is identified by
    rolling the lane-index vector too, so the result is independent of roll's direction."""
    acc = v
    s = 1
    while s < group:
        r1 = pltpu.roll(acc, s, axis=1)
        r2 = pltpu.roll(acc, 128 - s, axis=1)
        l1 = pltpu.roll(lane, s, axis=1)          # actual source lane of r1
        partner = jnp.where(l1 == (lane ^ s), r1, r2)
        acc = op(acc, partner)
        s *= 2
    return acc


# ---------------------------------------------------------------------------
# Kernels
# ---------------------------------------------------------------------------

def _focal_dense_kernel(x_ref, out_ref, *, gamma, group, n_valid, block_rows):
    """Lane-dense layout: tile is (block_rows, 128); each 128-lane row holds 128/group
    complete softmax groups of `group` consecutive elements."""
    i = pl.program_id(0)
    lane = jax.lax.broadcasted_iota(jnp.int32, (1, 128), 1)

    x = x_ref[...].astype(jnp.float32)                        # (bm, 128)
    m = _seg_butterfly(x, group, jnp.maximum, lane)            # per-group max (broadcast)
    xm = x - m
    e = jnp.exp(xm)
    s = _seg_butterfly(e, group, jnp.add, lane)                # per-group sum (broadcast)
    p = e * _recip(s)                                          # softmax
    logp = xm - jnp.log(s)                                     # log-softmax
    q = jnp.maximum(1.0 - p, 0.0)                              # sign-safe focal base
    t = _focal_weight(q, gamma) * logp                         # negation folded into partial

    is_last = i == pl.num_programs(0) - 1

    @pl.when(jnp.logical_not(is_last))
    def _():                                                   # interior tiles: no mask work
        out_ref[...] = -_tile_scalar(t)

    @pl.when(is_last)
    def _():                                                   # boundary tile: mask pad/garbage
        row = i * block_rows + jax.lax.broadcasted_iota(jnp.int32, (t.shape[0], 1), 0)
        full_rows = n_valid // 128
        rem = n_valid % 128
        valid = (row < full_rows) | ((row == full_rows) & (lane < rem))
        out_ref[...] = -_tile_scalar(jnp.where(valid, t, 0.0))


def _focal_rows_kernel(x_ref, out_ref, *, gamma, n_valid, block_rows):
    """Row-major layout: tile is (block_rows, C); classes on the lane axis (large C)."""
    i = pl.program_id(0)
    x = x_ref[...].astype(jnp.float32)                         # (bm, C)
    m = jnp.max(x, axis=-1, keepdims=True)
    xm = x - m
    e = jnp.exp(xm)
    s = jnp.sum(e, axis=-1, keepdims=True)
    p = e * _recip(s)
    logp = xm - jnp.log(s)
    q = jnp.maximum(1.0 - p, 0.0)
    t = _focal_weight(q, gamma) * logp

    is_last = i == pl.num_programs(0) - 1

    @pl.when(jnp.logical_not(is_last))
    def _():
        out_ref[...] = -_tile_scalar(t)

    @pl.when(is_last)
    def _():
        row = i * block_rows + jax.lax.broadcasted_iota(jnp.int32, (t.shape[0], 1), 0)
        out_ref[...] = -_tile_scalar(jnp.where(row < n_valid, t, 0.0))


# ---------------------------------------------------------------------------
# Wrapper
# ---------------------------------------------------------------------------

def _vmem_budget_bytes():
    """Explicit scoped-VMEM limit: ~3/4 of the reported per-core VMEM, clamped so that the
    derived block sizes are safe even on v7x (64 MiB physical) if the query misreports."""
    try:
        cap = int(getattr(pltpu.get_tpu_info(), "vmem_capacity_bytes", 64 << 20))
    except Exception:                       # any failure -> conservative default
        cap = 64 << 20
    if cap <= 0:
        cap = 64 << 20
    return max(8 << 20, min(cap * 3 // 4, 60 << 20))


def _pick_block_rows(total_rows, max_rows, min_tiles):
    """Largest 8-aligned row count that fits the VMEM budget, keeps >= min_tiles grid
    steps (v7x megacore) and does not exceed the (rounded-up) array."""
    br = max(8, (max_rows // 8) * 8)
    br = min(br, max(8, _round_up(pl.cdiv(total_rows, min_tiles), 8)))
    br = min(br, _round_up(total_rows, 8))
    return br


def focal_loss(preds, labels=None, *, gamma=2.0, size_average=True,
               vmem_limit_bytes=None, min_tiles=8):
    """Pallas FocalLoss forward.  `labels` is accepted (and ignored) to mirror the PyTorch
    module's forward signature, which never reads labels."""
    del labels  # unused by the reference forward
    C = preds.shape[-1]
    x = jnp.reshape(preds, (-1, C))          # view(-1, C); free for contiguous layouts
    N = x.shape[0]
    total = N * C
    denom = float(total) if size_average else 1.0
    itemsize = jnp.dtype(preds.dtype).itemsize

    if vmem_limit_bytes is None:
        vmem_limit_bytes = _vmem_budget_bytes()
    # Conservative live-set estimate: ~8 full f32 block temporaries + double-buffered
    # native-dtype input block; masks / per-tile scalars are noise.
    max_block_elems = max(8 * 128, int(vmem_limit_bytes) // (8 * 4 + 2 * itemsize))

    compiler_params = pltpu.CompilerParams(
        dimension_semantics=("parallel",),   # independent tiles -> both v7x TCs usable
        vmem_limit_bytes=int(vmem_limit_bytes),
    )

    lane_dense = (1 <= C <= 64) and (128 % C == 0)
    # TODO(synk): non power-of-two C < 128 falls back to the lane-sparse row path.

    if lane_dense:
        # Lane-dense path: view the flat logits as (rows, 128); every vreg row carries
        # 128/C complete softmax groups.  Only a <=127-element tail pad is ever needed.
        n_rows = pl.cdiv(total, 128)
        flat = jnp.reshape(x, (-1,))
        tail = n_rows * 128 - total
        if tail:
            flat = jnp.pad(flat, (0, tail))  # ragged tail only; zero-fill is loss-safe (masked)
        xd = jnp.reshape(flat, (n_rows, 128))

        block_rows = _pick_block_rows(n_rows, max_block_elems // 128, min_tiles)
        num_tiles = pl.cdiv(n_rows, block_rows)
        kernel = functools.partial(_focal_dense_kernel, gamma=float(gamma), group=C,
                                   n_valid=total, block_rows=block_rows)
        in_spec = pl.BlockSpec((block_rows, 128), lambda i: (i, 0))
        operand = xd
    else:
        # Row-major path (wide / non power-of-two C): classes on the lane axis.  No pad:
        # grid = cdiv(N, block_rows); OOB rows of the last block are masked in-kernel.
        block_rows = _pick_block_rows(N, max(1, max_block_elems // C), min_tiles)
        num_tiles = pl.cdiv(N, block_rows)
        kernel = functools.partial(_focal_rows_kernel, gamma=float(gamma),
                                   n_valid=N, block_rows=block_rows)
        in_spec = pl.BlockSpec((block_rows, C), lambda i: (i, 0))
        operand = x

    partials = pl.pallas_call(
        kernel,
        out_shape=jax.ShapeDtypeStruct((num_tiles, 1, 1), jnp.float32),
        grid_spec=pltpu.PrefetchScalarGridSpec(
            num_scalar_prefetch=0,
            grid=(num_tiles,),
            in_specs=[in_spec],
            out_specs=pl.BlockSpec((1, 1, 1), lambda i: (i, 0, 0)),
        ),
        compiler_params=compiler_params,
    )(operand)

    # Tiny final tree-reduce over per-tile scalar partials (keeps the grid fully parallel).
    return jnp.sum(partials) * jnp.float32(1.0 / denom)


# ---------------------------------------------------------------------------
# Reference + demo
# ---------------------------------------------------------------------------

def _focal_loss_ref(preds, gamma=2.0, size_average=True):
    C = preds.shape[-1]
    x = jnp.reshape(preds, (-1, C)).astype(jnp.float32)
    p = jax.nn.softmax(x, axis=1)
    logp = jax.nn.log_softmax(x, axis=1)
    loss = -jnp.power(1.0 - p, gamma) * logp
    return jnp.mean(loss) if size_average else jnp.sum(loss)


if __name__ == "__main__":
    key = jax.random.PRNGKey(0)
    kp, kl = jax.random.split(key)

    # Shapes consistent with the module: batch=2, seq=8, num_classes=4.
    # forward flattens everything but the class dim -> (16, 4)  (lane-dense path).
    batch, seq, num_classes = 2, 8, 4
    gamma = 2.0

    preds = jax.random.normal(kp, (batch, seq, num_classes), dtype=jnp.float32)
    labels = jax.random.randint(kl, (batch, seq), 0, num_classes)  # unused by forward

    out = jax.block_until_ready(focal_loss(preds, labels, gamma=gamma, size_average=True))
    ref = _focal_loss_ref(preds, gamma=gamma, size_average=True)
    assert jnp.allclose(out, ref, rtol=1e-4, atol=1e-6), (out, ref)

    # Multi-tile lane-dense case (interior unmasked tiles + masked boundary tile).
    preds1 = jax.random.normal(jax.random.PRNGKey(2), (8, 200, 4), dtype=jnp.float32)
    out1 = jax.block_until_ready(focal_loss(preds1, None, gamma=gamma, size_average=True))
    ref1 = _focal_loss_ref(preds1, gamma=gamma, size_average=True)
    assert jnp.allclose(out1, ref1, rtol=1e-4, atol=1e-6), (out1, ref1)

    # Wide-class (row-major) path + sum reduction.
    preds2 = jax.random.normal(jax.random.PRNGKey(1), (2, 3, 96), dtype=jnp.float32)
    out2 = jax.block_until_ready(focal_loss(preds2, None, gamma=gamma, size_average=False))
    ref2 = _focal_loss_ref(preds2, gamma=gamma, size_average=False)
    assert jnp.allclose(out2, ref2, rtol=1e-4, atol=1e-5), (out2, ref2)

    print("KERNEL_OK")
</pallas_src>

<mosaic_0001>
module attributes {stable_mosaic.version = 11 : i64} {
  func.func @_focal_dense_kernel(%arg0: i32, %arg1: memref<8x128xf32, #tpu.memory_space<vmem>>, %arg2: memref<1x1x1xf32, #tpu.memory_space<vmem>>) attributes {dimension_semantics = [#tpu.dimension_semantics<parallel>], iteration_bounds = array<i64: 1>, scalar_prefetch = 0 : i64, scratch_operands = 0 : i64, tpu.core_type = #tpu.core_type<tc>, window_params = [{transform_indices = @transform_0, window_bounds = array<i64: 8, 128>}, {transform_indices = @transform_1, window_bounds = array<i64: 1, 1, 1>}]} {
    %0 = tpu.iota {dimensions = array<i32: 1>} : vector<1x128xi32>
    %c0 = arith.constant 0 : index
    %c0_0 = arith.constant 0 : index
    %1 = vector.load %arg1[%c0, %c0_0] : memref<8x128xf32, #tpu.memory_space<vmem>>, vector<8x128xf32>
    %c1_i32 = arith.constant 1 : i32
    %2 = tpu.dynamic_rotate %1 by %c1_i32 dim 1 : vector<8x128xf32>, i32 -> vector<8x128xf32>
    %c127_i32 = arith.constant 127 : i32
    %3 = tpu.dynamic_rotate %1 by %c127_i32 dim 1 : vector<8x128xf32>, i32 -> vector<8x128xf32>
    %c1_i32_1 = arith.constant 1 : i32
    %4 = tpu.dynamic_rotate %0 by %c1_i32_1 dim 1 : vector<1x128xi32>, i32 -> vector<1x128xi32>
    %c1_i32_2 = arith.constant 1 : i32
    %5 = vector.broadcast %c1_i32_2 : i32 to vector<1x128xi32>
    %6 = arith.xori %0, %5 : vector<1x128xi32>
    %7 = arith.cmpi eq, %4, %6 : vector<1x128xi32>
    %8 = vector.shape_cast %7 : vector<1x128xi1> to vector<1x128xi1>
    %9 = vector.broadcast %8 : vector<1x128xi1> to vector<8x128xi1>
    %10 = arith.select %9, %2, %3 : vector<8x128xi1>, vector<8x128xf32>
    %11 = arith.maximumf %1, %10 : vector<8x128xf32>
    %c2_i32 = arith.constant 2 : i32
    %12 = tpu.dynamic_rotate %11 by %c2_i32 dim 1 : vector<8x128xf32>, i32 -> vector<8x128xf32>
    %c126_i32 = arith.constant 126 : i32
    %13 = tpu.dynamic_rotate %11 by %c126_i32 dim 1 : vector<8x128xf32>, i32 -> vector<8x128xf32>
    %c2_i32_3 = arith.constant 2 : i32
    %14 = tpu.dynamic_rotate %0 by %c2_i32_3 dim 1 : vector<1x128xi32>, i32 -> vector<1x128xi32>
    %c2_i32_4 = arith.constant 2 : i32
    %15 = vector.broadcast %c2_i32_4 : i32 to vector<1x128xi32>
    %16 = arith.xori %0, %15 : vector<1x128xi32>
    %17 = arith.cmpi eq, %14, %16 : vector<1x128xi32>
    %18 = vector.shape_cast %17 : vector<1x128xi1> to vector<1x128xi1>
    %19 = vector.broadcast %18 : vector<1x128xi1> to vector<8x128xi1>
    %20 = arith.select %19, %12, %13 : vector<8x128xi1>, vector<8x128xf32>
    %21 = arith.maximumf %11, %20 : vector<8x128xf32>
    %22 = arith.subf %1, %21 : vector<8x128xf32>
    %23 = math.exp %22 : vector<8x128xf32>
    %c1_i32_5 = arith.constant 1 : i32
    %24 = tpu.dynamic_rotate %23 by %c1_i32_5 dim 1 : vector<8x128xf32>, i32 -> vector<8x128xf32>
    %c127_i32_6 = arith.constant 127 : i32
    %25 = tpu.dynamic_rotate %23 by %c127_i32_6 dim 1 : vector<8x128xf32>, i32 -> vector<8x128xf32>
    %c1_i32_7 = arith.constant 1 : i32
    %26 = tpu.dynamic_rotate %0 by %c1_i32_7 dim 1 : vector<1x128xi32>, i32 -> vector<1x128xi32>
    %c1_i32_8 = arith.constant 1 : i32
    %27 = vector.broadcast %c1_i32_8 : i32 to vector<1x128xi32>
    %28 = arith.xori %0, %27 : vector<1x128xi32>
    %29 = arith.cmpi eq, %26, %28 : vector<1x128xi32>
    %30 = vector.shape_cast %29 : vector<1x128xi1> to vector<1x128xi1>
    %31 = vector.broadcast %30 : vector<1x128xi1> to vector<8x128xi1>
    %32 = arith.select %31, %24, %25 : vector<8x128xi1>, vector<8x128xf32>
    %33 = arith.addf %23, %32 : vector<8x128xf32>
    %c2_i32_9 = arith.constant 2 : i32
    %34 = tpu.dynamic_rotate %33 by %c2_i32_9 dim 1 : vector<8x128xf32>, i32 -> vector<8x128xf32>
    %c126_i32_10 = arith.constant 126 : i32
    %35 = tpu.dynamic_rotate %33 by %c126_i32_10 dim 1 : vector<8x128xf32>, i32 -> vector<8x128xf32>
    %c2_i32_11 = arith.constant 2 : i32
    %36 = tpu.dynamic_rotate %0 by %c2_i32_11 dim 1 : vector<1x128xi32>, i32 -> vector<1x128xi32>
    %c2_i32_12 = arith.constant 2 : i32
    %37 = vector.broadcast %c2_i32_12 : i32 to vector<1x128xi32>
    %38 = arith.xori %0, %37 : vector<1x128xi32>
    %39 = arith.cmpi eq, %36, %38 : vector<1x128xi32>
    %40 = vector.shape_cast %39 : vector<1x128xi1> to vector<1x128xi1>
    %41 = vector.broadcast %40 : vector<1x128xi1> to vector<8x128xi1>
    %42 = arith.select %41, %34, %35 : vector<8x128xi1>, vector<8x128xf32>
    %43 = arith.addf %33, %42 : vector<8x128xf32>
    %44 = tpu.reciprocal %43 {approx = true} : vector<8x128xf32> -> vector<8x128xf32>
    %45 = arith.mulf %43, %44 : vector<8x128xf32>
    %cst = arith.constant 2.000000e+00 : f32
    %46 = vector.broadcast %cst : f32 to vector<8x128xf32>
    %47 = arith.subf %46, %45 : vector<8x128xf32>
    %48 = arith.mulf %44, %47 : vector<8x128xf32>
    %49 = arith.mulf %43, %48 : vector<8x128xf32>
    %cst_13 = arith.constant 2.000000e+00 : f32
    %50 = vector.broadcast %cst_13 : f32 to vector<8x128xf32>
    %51 = arith.subf %50, %49 : vector<8x128xf32>
    %52 = arith.mulf %48, %51 : vector<8x128xf32>
    %53 = arith.mulf %23, %52 : vector<8x128xf32>
    %54 = math.log %43 : vector<8x128xf32>
    %55 = arith.subf %22, %54 : vector<8x128xf32>
    %cst_14 = arith.constant 1.000000e+00 : f32
    %56 = vector.broadcast %cst_14 : f32 to vector<8x128xf32>
    %57 = arith.subf %56, %53 : vector<8x128xf32>
    %cst_15 = arith.constant 0.000000e+00 : f32
    %58 = vector.broadcast %cst_15 : f32 to vector<8x128xf32>
    %59 = arith.maximumf %57, %58 : vector<8x128xf32>
    %60 = arith.mulf %59, %59 : vector<8x128xf32>
    %61 = arith.mulf %60, %55 : vector<8x128xf32>
    %c0_i32 = arith.constant 0 : i32
    %62 = arith.cmpi eq, %arg0, %c0_i32 : i32
    %true = arith.constant true
    %63 = arith.xori %62, %true : i1
    %64 = arith.extui %63 : i1 to i32
    %c0_i32_16 = arith.constant 0 : i32
    %65 = arith.cmpi ne, %64, %c0_i32_16 : i32
    scf.if %65 {
      %cst_18 = arith.constant dense<0.000000e+00> : vector<8xf32>
      %68 = vector.multi_reduction <add>, %61, %cst_18 [1] : vector<8x128xf32> to vector<8xf32>
      %69 = vector.shape_cast %68 : vector<8xf32> to vector<8x1xf32>
      %cst_19 = arith.constant dense<0.000000e+00> : vector<1xf32>
      %70 = vector.multi_reduction <add>, %69, %cst_19 [0] : vector<8x1xf32> to vector<1xf32>
      %71 = vector.shape_cast %70 : vector<1xf32> to vector<1x1xf32>
      %72 = vector.shape_cast %71 : vector<1x1xf32> to vector<1x1x1xf32>
      %cst_20 = arith.constant 0.000000e+00 : f32
      %73 = vector.broadcast %cst_20 : f32 to vector<1x1x1xf32>
      %74 = arith.subf %73, %72 : vector<1x1x1xf32>
      %c0_21 = arith.constant 0 : index
      %c0_22 = arith.constant 0 : index
      %c0_23 = arith.constant 0 : index
      %75 = vector.load %arg2[%c0_21, %c0_22, %c0_23] : memref<1x1x1xf32, #tpu.memory_space<vmem>>, vector<1x1x1xf32>
      tpu.vector_store %arg2[%c0_21, %c0_22, %c0_23], %74 {strides = array<i32>} : memref<1x1x1xf32, #tpu.memory_space<vmem>>, vector<1x1x1xf32>,
    } else {
    }
    %66 = arith.extui %62 : i1 to i32
    %c0_i32_17 = arith.constant 0 : i32
    %67 = arith.cmpi ne, %66, %c0_i32_17 : i32
    scf.if %67 {
      %c8_i32 = arith.constant 8 : i32
      %68 = arith.muli %arg0, %c8_i32 : i32
      %69 = tpu.iota {dimensions = array<i32: 0>} : vector<8x1xi32>
      %70 = vector.broadcast %68 : i32 to vector<8x1xi32>
      %71 = arith.addi %70, %69 : vector<8x1xi32>
      %c0_i32_18 = arith.constant 0 : i32
      %72 = vector.broadcast %c0_i32_18 : i32 to vector<8x1xi32>
      %73 = arith.cmpi slt, %71, %72 : vector<8x1xi32>
      %c0_i32_19 = arith.constant 0 : i32
      %74 = vector.broadcast %c0_i32_19 : i32 to vector<8x1xi32>
      %75 = arith.cmpi eq, %71, %74 : vector<8x1xi32>
      %c64_i32 = arith.constant 64 : i32
      %76 = vector.broadcast %c64_i32 : i32 to vector<1x128xi32>
      %77 = arith.cmpi slt, %0, %76 : vector<1x128xi32>
      %78 = vector.broadcast %75 : vector<8x1xi1> to vector<8x128xi1>
      %79 = vector.broadcast %77 : vector<1x128xi1> to vector<8x128xi1>
      %80 = arith.andi %78, %79 : vector<8x128xi1>
      %81 = vector.broadcast %73 : vector<8x1xi1> to vector<8x128xi1>
      %82 = arith.ori %81, %80 : vector<8x128xi1>
      %cst_20 = arith.constant 0.000000e+00 : f32
      %83 = vector.broadcast %cst_20 : f32 to vector<8x128xf32>
      %84 = arith.select %82, %61, %83 : vector<8x128xi1>, vector<8x128xf32>
      %cst_21 = arith.constant dense<0.000000e+00> : vector<8xf32>
      %85 = vector.multi_reduction <add>, %84, %cst_21 [1] : vector<8x128xf32> to vector<8xf32>
      %86 = vector.shape_cast %85 : vector<8xf32> to vector<8x1xf32>
      %cst_22 = arith.constant dense<0.000000e+00> : vector<1xf32>
      %87 = vector.multi_reduction <add>, %86, %cst_22 [0] : vector<8x1xf32> to vector<1xf32>
      %88 = vector.shape_cast %87 : vector<1xf32> to vector<1x1xf32>
      %89 = vector.shape_cast %88 : vector<1x1xf32> to vector<1x1x1xf32>
      %cst_23 = arith.constant 0.000000e+00 : f32
      %90 = vector.broadcast %cst_23 : f32 to vector<1x1x1xf32>
      %91 = arith.subf %90, %89 : vector<1x1x1xf32>
      %c0_24 = arith.constant 0 : index
      %c0_25 = arith.constant 0 : index
      %c0_26 = arith.constant 0 : index
      %92 = vector.load %arg2[%c0_24, %c0_25, %c0_26] : memref<1x1x1xf32, #tpu.memory_space<vmem>>, vector<1x1x1xf32>
      tpu.vector_store %arg2[%c0_24, %c0_25, %c0_26], %91 {strides = array<i32>} : memref<1x1x1xf32, #tpu.memory_space<vmem>>, vector<1x1x1xf32>,
    } else {
    }
    return
  }
  func.func @transform_0(%arg0: i32) -> (i32, i32) {
    %c0_i32 = arith.constant 0 : i32
    %c0_i32_0 = arith.constant 0 : i32
    return %arg0, %c0_i32 : i32, i32
  }
  func.func @transform_1(%arg0: i32) -> (i32, i32, i32) {
    %c0_i32 = arith.constant 0 : i32
    %c0_i32_0 = arith.constant 0 : i32
    %c0_i32_1 = arith.constant 0 : i32
    return %arg0, %c0_i32, %c0_i32_0 : i32, i32, i32
  }
}

</mosaic_0001>

<llo_original>
// kernel: tpu_custom_call.1
$region0: #{tpu_custom_call.1}
  #allocation0 [shape = 'u32[]', space=smem, size = 0x4, offset = 0x4, fixed_abs, tag = 'smem constant byte address 0x4 - core index']
  #allocation1 [shape = 'u32[144,128]{1,0:T(1,128)}', space=vmem, size = 0x12000, scoped, tag = 'internal scratch']
  %s0 = inlined_call_operand.hbm [shape: f32[1,128], index: 0, kind: input, shape index: {}]
  %s1 = inlined_call_operand.hbm [shape: f32[1,1,1], index: 1, kind: output, shape index: {}]
  %s2 = sld [smem:[#allocation0]]
  $region26: #{tpu_custom_call.1} parent=0
    _
  %s4 = ssub.s32 1, %s2
  %s5 = scalar_select 0, %s4, %s2
  $region1: #{tpu_custom_call.1} parent=0
    #allocation2 [shape = 'u8[4096]{0}', space=vmem, size = 0x1000, scoped, tag = 'input window, operand 0, single buffered']
    #allocation3 [shape = 's32[1]{0}', space=sflag, size = 0x4, scoped, tag = 'scoped memory for tpu_custom_call.1']
    #allocation4 [shape = 's32[1]{0}', space=sflag, size = 0x4, scoped, tag = 'scoped memory for tpu_custom_call.1']
    #allocation5 [shape = 'u8[512]{0}', space=vmem, size = 0x400, scoped, tag = 'output window, operand 0, single buffered']
    %6 = vsyncpa [#allocation3], 0
    %7 = vsyncpa [#allocation4], 0
    // Predicated region
    $region2: #{tpu_custom_call.1} parent=1 // pred_check
      _
    $region3: #{tpu_custom_call.1} parent=1 // pred_check_branch
      %9 = sbr.rel (0) target = $region5
    $region4: #{tpu_custom_call.1} parent=1 // pred_region
      %s11 = ssub.s32 128, 16
      %12 = vsyncadd [#allocation3], %s11
      %s13 = sshll.u32 [#allocation2], 4
      %s14 = int_to_ptr.vmem [resolvable:$true] %s13
      %19 = dma.hbm_to_vmem [thread:$0]  %s0, 16, %s14, [#allocation3], 16, 16, 1
    $region5: #{tpu_custom_call.1} parent=1 // pred_fallthru
      _
    // Predicated region
    $region6: #{tpu_custom_call.1} parent=1 // pred_check
      _
    $region7: #{tpu_custom_call.1} parent=1 // pred_check_branch
      %21 = sbr.rel (0) target = $region9
    $region8: #{tpu_custom_call.1} parent=1 // pred_region
      %22 = dma.done [#allocation3], 128
    $region9: #{tpu_custom_call.1} parent=1 // pred_fallthru
      _
    %v23 = vlaneseq
    %v24 = vand.u32 %v23, 127
    %v25 = vld [vmem:[#allocation2] sm:$0xff]
    %26 = vrot.lane.b32.xlu0 %v25, 1
    %v27 = vpop.permute.xlu0 %26
    %28 = vrot.lane.b32.xlu0 %v25, 127
    %v29 = vpop.permute.xlu0 %28
    %30 = vrot.lane.b32.xlu0 %v24, 1
    %v31 = vpop.permute.xlu0 %30
    %v32 = vxor.u32 %v24, 1
    %vm33 = vcmp.eq.s32.totalorder %v31, %v32
    %v34 = vsel %vm33, 1, 0
    %v35 = vlaneseq
    %v36 = vshrl.u32 %v35, 7
    %v37 = vsub.s32 0, %v36
    %v38 = vrot.slane %v34, %v37
    %vm39 = vcmp.eq.s32.totalorder %v38, 1
    %v40 = vsel %vm39, %v27, %v29
    %v41 = vmax.f32 %v25, %v40
    %42 = vrot.lane.b32.xlu0 %v41, 2
    %v43 = vpop.permute.xlu0 %42
    %44 = vrot.lane.b32.xlu0 %v41, 126
    %v45 = vpop.permute.xlu0 %44
    %46 = vrot.lane.b32.xlu0 %v24, 2
    %v47 = vpop.permute.xlu0 %46
    %v48 = vxor.u32 %v24, 2
    %vm49 = vcmp.eq.s32.totalorder %v47, %v48
    %v50 = vsel %vm49, 1, 0
    %v51 = vlaneseq
    %v52 = vshrl.u32 %v51, 7
    %v53 = vsub.s32 0, %v52
    %v54 = vrot.slane %v50, %v53
    %vm55 = vcmp.eq.s32.totalorder %v54, 1
    %v56 = vsel %vm55, %v43, %v45
    %v57 = vmax.f32 %v41, %v56
    %v58 = vsub.f32 %v25, %v57
    %v59 = vmul.f32 %v58, 1.442695
    %v60 = vpow.pop %v59
    %61 = vrot.lane.b32.xlu0 %v60, 1
    %v62 = vpop.permute.xlu0 %61
    %63 = vrot.lane.b32.xlu0 %v60, 127
    %v64 = vpop.permute.xlu0 %63
    %v65 = vsel %vm39, %v62, %v64
    %v66 = vadd.f32 %v60, %v65
    %67 = vrot.lane.b32.xlu0 %v66, 2
    %v68 = vpop.permute.xlu0 %67
    %69 = vrot.lane.b32.xlu0 %v66, 126
    %v70 = vpop.permute.xlu0 %69
    %v71 = vsel %vm55, %v68, %v70
    %v72 = vadd.f32 %v66, %v71
    %v73 = vrcp.pop %v72
    %v74 = vmul.f32 %v72, %v73
    %v75 = vsub.f32 2.0, %v74
    %v76 = vmul.f32 %v73, %v75
    %v77 = vmul.f32 %v72, %v76
    %v78 = vsub.f32 2.0, %v77
    %v79 = vmul.f32 %v76, %v78
    %v80 = vmul.f32 %v60, %v79
    %v81 = vlog2.pop %v72
    %v82 = vmul.f32 %v81, 0.6931472
    %v83 = vsub.f32 %v58, %v82
    %v84 = vsub.f32 1.0, %v80
    %v85 = vmax.f32 %v84, 0.0
    %v86 = vmul.f32 %v85, %v85
    %v87 = vmul.f32 %v86, %v83
    %p88 = scmp.eq.s32.totalorder 0, 0
    %p89 = scmp.ne.s32.totalorder 0, 0
    // Predicated region
    $region10: #{tpu_custom_call.1} parent=1 // pred_check
      %p90 = pneg %p89
    $region11: #{tpu_custom_call.1} parent=1 // pred_check_branch
      %92 = sbr.rel (%p90) target = $region13
    $region12: #{tpu_custom_call.1} parent=1 // pred_region
      %93 = vadd.xlane.f32.xlu0 %v87
      %v94 = vpop.xlane.xlu0 %93
      %v95 = vrot.slane %v94, 4
      %v96 = vadd.f32 %v94, %v95
      %v97 = vrot.slane %v96, 2
      %v98 = vadd.f32 %v96, %v97
      %v99 = vrot.slane %v98, 1
      %v100 = vadd.f32 %v98, %v99
      %v101 = vsub.f32 0.0, %v100
      %vm102 = vcmask 0
      %103 = vst.msk [vmem:[#allocation5] sm:$0x1] %vm102, %v101
    $region13: #{tpu_custom_call.1} parent=1 // pred_fallthru
      _
    // Predicated region
    $region14: #{tpu_custom_call.1} parent=1 // pred_check
      %p104 = pneg %p88
    $region15: #{tpu_custom_call.1} parent=1 // pred_check_branch
      %106 = sbr.rel (%p104) target = $region17
    $region16: #{tpu_custom_call.1} parent=1 // pred_region
      %s107 = smul.u32 0, 8
      %v108 = vlaneseq
      %v109 = vshrl.u32 %v108, 7
      %v110 = vstv %s107
      %v111 = vadd.s32 %v110, %v109
      %vm112 = vcmp.lt.s32.totalorder %v111, 0
      %vm113 = vcmp.eq.s32.totalorder %v111, 0
      %vm114 = vcmp.lt.s32.totalorder %v24, 64
      %v115 = vsel %vm113, 1, 0
      %vm116 = vcmp.eq.s32.totalorder %v115, 1
      %v117 = vsel %vm114, 1, 0
      %vm118 = vcmp.eq.s32.totalorder %v117, 1
      %vm119 = vmand %vm116, %vm118
      %v120 = vsel %vm112, 1, 0
      %vm121 = vcmp.eq.s32.totalorder %v120, 1
      %vm122 = vmor %vm121, %vm119
      %v123 = vsel %vm122, %v87, 0.0
      %124 = vadd.xlane.f32.xlu0 %v123
      %v125 = vpop.xlane.xlu0 %124
      %v126 = vrot.slane %v125, 4
      %v127 = vadd.f32 %v125, %v126
      %v128 = vrot.slane %v127, 2
      %v129 = vadd.f32 %v127, %v128
      %v130 = vrot.slane %v129, 1
      %v131 = vadd.f32 %v129, %v130
      %v132 = vsub.f32 0.0, %v131
      %vm133 = vcmask 0
      %134 = vst.msk [vmem:[#allocation5] sm:$0x1] %vm133, %v132
    $region17: #{tpu_custom_call.1} parent=1 // pred_fallthru
      _
    // Predicated region
    $region18: #{tpu_custom_call.1} parent=1 // pred_check
      _
    $region19: #{tpu_custom_call.1} parent=1 // pred_check_branch
      %136 = sbr.rel (0) target = $region21
    $region20: #{tpu_custom_call.1} parent=1 // pred_region
      %s138 = ssub.s32 16, 16
      %139 = vsyncadd [#allocation4], %s138
      %s141 = sshll.u32 [#allocation5], 4
      %s142 = int_to_ptr.vmem [resolvable:$true] %s141
      %144 = dma.vmem_to_hbm [thread:$0]  %s142, 16, %s1, [#allocation4]
    $region21: #{tpu_custom_call.1} parent=1 // pred_fallthru
      _
    // Predicated region
    $region22: #{tpu_custom_call.1} parent=1 // pred_check
      _
    $region23: #{tpu_custom_call.1} parent=1 // pred_check_branch
      %146 = sbr.rel (0) target = $region25
    $region24: #{tpu_custom_call.1} parent=1 // pred_region
      %147 = dma.done [#allocation4], 16
    $region25: #{tpu_custom_call.1} parent=1 // pred_fallthru
      _
    %148 = vsyncpa [#allocation3], 1
    %149 = vsyncpa [#allocation4], 1

</llo_original>
